<compile_context>
chip_gen: v7x
topology: tpu7x:2x2x1
jax: 0.10.0
libtpu: 0.0.40
codegen_flags: <defaults>
</compile_context>

<pallas_src>
import functools

import jax
import jax.numpy as jnp
from jax.experimental import pallas as pl
from jax.experimental.pallas import tpu as pltpu

_LANES = 128
_SUBLANES = 8


# ---------------------------------------------------------------------------
# Kernel
# ---------------------------------------------------------------------------
def _unary_kernel(x_ref, o_ref, *, f):
    # Whole tile load -> VPU/EUP elementwise -> whole tile store.
    o_ref[...] = f(x_ref[...]).astype(o_ref.dtype)


def _round_up(a, b):
    return -(-a // b) * b


# ---------------------------------------------------------------------------
# Wrapper (flatten -> lane-dense slab -> pallas_call; jnp for the tiny tail)
# ---------------------------------------------------------------------------
def torch_unary_op(x, f, *, block_rows=4096):
    """Equivalent of TorchUnaryOp(f).forward(x): elementwise f applied to x."""
    orig_shape = x.shape
    n = x.size

    # Result dtype follows f (e.g. int inputs promoted to float by exp/sqrt).
    out_dtype = jax.eval_shape(f, jax.ShapeDtypeStruct((), x.dtype)).dtype

    if n == 0:
        return jnp.zeros(orig_shape, out_dtype)

    x_flat = jnp.ravel(x)

    # Lane-aligned main slab goes through the Pallas kernel; the <128-element
    # remainder (rare, only for numel % 128 != 0) is handled outside.
    main_n = (n // _LANES) * _LANES
    tail_n = n - main_n

    pieces = []
    if main_n:
        rows = main_n // _LANES

        # Row tile: large (2 MiB f32 blocks by default) and a multiple of the
        # sublane count.  A cdiv grid handles a ragged last block, so
        # arbitrary sizes keep big blocks (no exact-divisor collapse).
        br = min(_round_up(min(block_rows, rows), _SUBLANES), _round_up(rows, _SUBLANES))
        grid = (pl.cdiv(rows, br),)

        in_block_bytes = br * _LANES * x.dtype.itemsize
        out_block_bytes = br * _LANES * jnp.dtype(out_dtype).itemsize
        # Double-buffered input + output tiles plus headroom; capped well
        # under every chip's physical VMEM (64 MiB on v7x).
        vmem_limit = int(min(2 * (in_block_bytes + out_block_bytes) + (4 << 20),
                             48 << 20))

        x2d = x_flat[:main_n].reshape(rows, _LANES)

        out2d = pl.pallas_call(
            functools.partial(_unary_kernel, f=f),
            out_shape=jax.ShapeDtypeStruct((rows, _LANES), out_dtype),
            grid_spec=pltpu.PrefetchScalarGridSpec(
                num_scalar_prefetch=0,
                grid=grid,
                in_specs=[pl.BlockSpec((br, _LANES), lambda i: (i, 0))],
                out_specs=pl.BlockSpec((br, _LANES), lambda i: (i, 0)),
            ),
            compiler_params=pltpu.CompilerParams(
                dimension_semantics=("parallel",),  # shards across TCs on v7x
                vmem_limit_bytes=vmem_limit,
            ),
        )(x2d)
        pieces.append(out2d.reshape(-1))

    if tail_n:
        # Tiny ragged tail (<128 elems): plain jnp, negligible HBM traffic.
        pieces.append(f(x_flat[main_n:]).astype(out_dtype))

    out_flat = pieces[0] if len(pieces) == 1 else jnp.concatenate(pieces)
    return out_flat.reshape(orig_shape)


# ---------------------------------------------------------------------------
# Demo / self-test
# ---------------------------------------------------------------------------
if __name__ == "__main__":
    key = jax.random.PRNGKey(0)
    ok = True

    def check(name, y, y_ref, rtol=1e-5, atol=1e-5):
        global ok
        y = jax.block_until_ready(y)
        if y.shape != y_ref.shape or y.dtype != y_ref.dtype:
            ok = False
            print(f"MISMATCH (shape/dtype) in {name}: {y.shape}/{y.dtype} "
                  f"vs {y_ref.shape}/{y_ref.dtype}")
            return
        if not jnp.allclose(y.astype(jnp.float32), y_ref.astype(jnp.float32),
                            rtol=rtol, atol=atol):
            ok = False
            print(f"MISMATCH in {name}")

    # 1) Typical NCHW float32 input, representative unary math ops.
    x = jax.random.normal(key, (2, 4, 16, 16), dtype=jnp.float32)
    ops = {
        "exp": jnp.exp,
        "abs": jnp.abs,
        "neg": lambda v: -v,
        "tanh": jnp.tanh,
        "sqrt": lambda v: jnp.sqrt(jnp.abs(v)),  # keep domain valid
    }
    for name, fn in ops.items():
        check(name, torch_unary_op(x, fn), fn(x))

    # 2) Odd shape exercising the ragged (<128 elem) tail path.
    k1, k2, k3 = jax.random.split(key, 3)
    x_odd = jax.random.normal(k1, (5, 7, 33), dtype=jnp.float32)
    check("tanh_ragged_tail", torch_unary_op(x_odd, jnp.tanh), jnp.tanh(x_odd))

    # 3) Ragged last block of the cdiv grid (forced small block_rows).
    x_big = jax.random.normal(k2, (2, 520, 128), dtype=jnp.float32)
    check("exp_ragged_block",
          torch_unary_op(x_big, jnp.exp, block_rows=64), jnp.exp(x_big))

    # 4) bf16 (sublane-packed dtype).
    x_bf = jax.random.normal(k3, (4, 8, 128), dtype=jnp.bfloat16)
    check("exp_bf16", torch_unary_op(x_bf, jnp.exp), jnp.exp(x_bf),
          rtol=2e-2, atol=2e-2)

    # 5) dtype-changing op: int32 input promoted to float32 by exp.
    x_int = jax.random.randint(key, (2, 8, 128), 0, 5, dtype=jnp.int32)
    check("exp_int32", torch_unary_op(x_int, jnp.exp), jnp.exp(x_int))

    if ok:
        print("KERNEL_OK")
</pallas_src>

<mosaic_0001>
module attributes {stable_mosaic.version = 11 : i64} {
  func.func @_unary_kernel(%arg0: i32, %arg1: memref<16x128xf32, #tpu.memory_space<vmem>>, %arg2: memref<16x128xf32, #tpu.memory_space<vmem>>) attributes {dimension_semantics = [#tpu.dimension_semantics<parallel>], iteration_bounds = array<i64: 1>, scalar_prefetch = 0 : i64, scratch_operands = 0 : i64, tpu.core_type = #tpu.core_type<tc>, window_params = [{transform_indices = @transform_0, window_bounds = array<i64: 16, 128>}, {transform_indices = @transform_1, window_bounds = array<i64: 16, 128>}]} {
    %c0 = arith.constant 0 : index
    %c0_0 = arith.constant 0 : index
    %0 = vector.load %arg1[%c0, %c0_0] : memref<16x128xf32, #tpu.memory_space<vmem>>, vector<16x128xf32>
    %1 = math.exp %0 : vector<16x128xf32>
    %c0_1 = arith.constant 0 : index
    %c0_2 = arith.constant 0 : index
    %2 = vector.load %arg2[%c0_1, %c0_2] : memref<16x128xf32, #tpu.memory_space<vmem>>, vector<16x128xf32>
    tpu.vector_store %arg2[%c0_1, %c0_2], %1 {strides = array<i32>} : memref<16x128xf32, #tpu.memory_space<vmem>>, vector<16x128xf32>,
    return
  }
  func.func @transform_0(%arg0: i32) -> (i32, i32) {
    %c0_i32 = arith.constant 0 : i32
    %c0_i32_0 = arith.constant 0 : i32
    return %arg0, %c0_i32 : i32, i32
  }
  func.func @transform_1(%arg0: i32) -> (i32, i32) {
    %c0_i32 = arith.constant 0 : i32
    %c0_i32_0 = arith.constant 0 : i32
    return %arg0, %c0_i32 : i32, i32
  }
}

</mosaic_0001>

<llo_original>
// kernel: tpu_custom_call.1
$region0: #{tpu_custom_call.1}
  #allocation0 [shape = 'u32[]', space=smem, size = 0x4, offset = 0x4, fixed_abs, tag = 'smem constant byte address 0x4 - core index']
  #allocation1 [shape = 'u32[144,128]{1,0:T(1,128)}', space=vmem, size = 0x12000, scoped, tag = 'internal scratch']
  %s0 = inlined_call_operand.hbm [shape: f32[16,128], index: 0, kind: input, shape index: {}]
  %s1 = inlined_call_operand.hbm [shape: f32[16,128], index: 1, kind: output, shape index: {}]
  %s2 = sld [smem:[#allocation0]]
  $region18: #{tpu_custom_call.1} parent=0
    _
  %s4 = ssub.s32 1, %s2
  %s5 = scalar_select 0, %s4, %s2
  $region1: #{tpu_custom_call.1} parent=0
    #allocation2 [shape = 'u8[8192]{0}', space=vmem, size = 0x2000, scoped, tag = 'input window, operand 0, single buffered']
    #allocation3 [shape = 's32[1]{0}', space=sflag, size = 0x4, scoped, tag = 'scoped memory for tpu_custom_call.1']
    #allocation4 [shape = 's32[1]{0}', space=sflag, size = 0x4, scoped, tag = 'scoped memory for tpu_custom_call.1']
    #allocation5 [shape = 'u8[8192]{0}', space=vmem, size = 0x2000, scoped, tag = 'output window, operand 0, single buffered']
    %6 = vsyncpa [#allocation3], 0
    %7 = vsyncpa [#allocation4], 0
    // Predicated region
    $region2: #{tpu_custom_call.1} parent=1 // pred_check
      _
    $region3: #{tpu_custom_call.1} parent=1 // pred_check_branch
      %9 = sbr.rel (0) target = $region5
    $region4: #{tpu_custom_call.1} parent=1 // pred_region
      %s11 = ssub.s32 256, 256
      %12 = vsyncadd [#allocation3], %s11
      %s13 = sshll.u32 [#allocation2], 4
      %s14 = int_to_ptr.vmem [resolvable:$true] %s13
      %19 = dma.hbm_to_vmem [thread:$0]  %s0, 256, %s14, [#allocation3], 128, 128, 8
    $region5: #{tpu_custom_call.1} parent=1 // pred_fallthru
      _
    // Predicated region
    $region6: #{tpu_custom_call.1} parent=1 // pred_check
      _
    $region7: #{tpu_custom_call.1} parent=1 // pred_check_branch
      %21 = sbr.rel (0) target = $region9
    $region8: #{tpu_custom_call.1} parent=1 // pred_region
      %22 = dma.done [#allocation3], 256
    $region9: #{tpu_custom_call.1} parent=1 // pred_fallthru
      _
    %v23 = vld [vmem:[#allocation2] sm:$0xff]
    %v24 = vld [vmem:[#allocation2 + $0x8] sm:$0xff]
    %v25 = vmul.f32 %v23, 1.442695
    %v26 = vpow.pop %v25
    %v27 = vmul.f32 %v24, 1.442695
    %v28 = vpow.pop %v27
    %29 = vst [vmem:[#allocation5] sm:$0xff] %v26
    %30 = vst [vmem:[#allocation5 + $0x8] sm:$0xff] %v28
    // Predicated region
    $region10: #{tpu_custom_call.1} parent=1 // pred_check
      _
    $region11: #{tpu_custom_call.1} parent=1 // pred_check_branch
      %32 = sbr.rel (0) target = $region13
    $region12: #{tpu_custom_call.1} parent=1 // pred_region
      %s34 = ssub.s32 256, 256
      %35 = vsyncadd [#allocation4], %s34
      %s36 = sshll.u32 [#allocation5], 4
      %s37 = int_to_ptr.vmem [resolvable:$true] %s36
      %42 = dma.vmem_to_hbm [thread:$0]  %s37, 256, %s1, [#allocation4], 128, 128, 8
    $region13: #{tpu_custom_call.1} parent=1 // pred_fallthru
      _
    // Predicated region
    $region14: #{tpu_custom_call.1} parent=1 // pred_check
      _
    $region15: #{tpu_custom_call.1} parent=1 // pred_check_branch
      %44 = sbr.rel (0) target = $region17
    $region16: #{tpu_custom_call.1} parent=1 // pred_region
      %45 = dma.done [#allocation4], 256
    $region17: #{tpu_custom_call.1} parent=1 // pred_fallthru
      _
    %46 = vsyncpa [#allocation3], 1
    %47 = vsyncpa [#allocation4], 1

</llo_original>
